<compile_context>
chip_gen: v5e
topology: v5e:2x2
jax: 0.10.0
libtpu: 0.0.40
codegen_flags: <defaults>
</compile_context>

<pallas_src>
import functools
import math

import jax
import jax.numpy as jnp
from jax.experimental import pallas as pl
from jax.experimental.pallas import tpu as pltpu

S_SCALE = 30.0
MARGIN = 0.4
EPS = 1e-7
NORM_EPS = 1e-12          # torch.nn.functional.normalize default eps
NEG_BIG = -1e30           # finite stand-in for -inf (avoids inf/NaN arithmetic)
COS_M = math.cos(MARGIN)
SIN_M = math.sin(MARGIN)


def _round_up(a, b):
    return (a + b - 1) // b * b


def _class_tiling(num_classes, block_c):
    """Class tile / padded class count (256-aligned for v6e/v7x MXU passes)."""
    if num_classes >= block_c:
        tc = _round_up(block_c, 256)
    else:
        tc = _round_up(num_classes, 256)
    return tc, _round_up(num_classes, tc)


def preprocess_weight(weight, *, matmul_dtype=jnp.bfloat16, block_c=512):
    """One-time conversion of an nn.Linear weight (out_features, in_features)
    to the kernel's MXU-native layout: zero-padded (D_pad, C_pad) in
    matmul_dtype.  Pass the result to arc_loss(..., out_features=C) to avoid
    re-padding / re-casting / transposing the full weight matrix every call."""
    C, D = weight.shape
    d_pad = _round_up(D, 256)
    _, c_pad = _class_tiling(C, block_c)
    w = jnp.pad(weight.astype(matmul_dtype), ((0, c_pad - C), (0, d_pad - D)))
    return w.T                                                # (D_pad, C_pad)


def _arcloss_kernel(xn_ref, w_ref, labels_ref, *refs, num_classes, block_c,
                    needs_class_mask, store_cos):
    if store_cos:
        cos_ref, loss_ref, m_ref, l_ref, tgt_ref = refs
    else:
        cos_ref = None
        loss_ref, m_ref, l_ref, tgt_ref = refs

    c = pl.program_id(1)

    # ---- reset per-batch-tile accumulators on the first class tile ----
    @pl.when(c == 0)
    def _():
        m_ref[...] = jnp.full(m_ref.shape, NEG_BIG, jnp.float32)
        l_ref[...] = jnp.zeros(l_ref.shape, jnp.float32)
        tgt_ref[...] = jnp.zeros(tgt_ref.shape, jnp.float32)

    # ---- MXU matmul in the native (M,K)x(K,N) layout ----
    cos_tile = jnp.dot(xn_ref[...], w_ref[...],
                       preferred_element_type=jnp.float32)    # (TB, TC) f32
    if store_cos:
        cos_ref[...] = cos_tile.astype(cos_ref.dtype)

    labels = labels_ref[...]                                  # (TB, 1) int32
    tb, tc = cos_tile.shape
    local_ids = jax.lax.broadcasted_iota(jnp.int32, (tb, tc), 1)
    is_target = local_ids == (labels - c * block_c)           # per-row one-hot

    # target cos_theta (exactly one class tile contributes per row)
    tgt_ref[...] += jnp.sum(jnp.where(is_target, cos_tile, 0.0),
                            axis=1, keepdims=True)

    # Exclude the target class (and, on the last tile, padded classes) directly
    # from the online log-sum-exp -> identical to the reference's masked sum,
    # no subtraction / catastrophic cancellation at finalize.
    mask_out = is_target
    if needs_class_mask:
        mask_out = jnp.logical_or(mask_out,
                                  local_ids >= num_classes - c * block_c)
    logits = jnp.where(mask_out, NEG_BIG, S_SCALE * cos_tile)

    # TODO(synk): on v6e/v7x a bf16 exp here (~2x EUP throughput) helps small-D
    # configs once no longer DMA-bound; kept f32 for v5e and precision.
    m_prev = m_ref[...]
    m_new = jnp.maximum(m_prev, jnp.max(logits, axis=1, keepdims=True))
    l_ref[...] = (l_ref[...] * jnp.exp(m_prev - m_new)
                  + jnp.sum(jnp.exp(logits - m_new), axis=1, keepdims=True))
    m_ref[...] = m_new

    # ---- finalize on the last class tile ----
    @pl.when(c == pl.num_programs(1) - 1)
    def _():
        t = jnp.clip(tgt_ref[...], -1.0 + EPS, 1.0 - EPS)
        # s * cos(acos(t) + m) == s * (t*cos(m) - sqrt(1 - t^2)*sin(m))
        numerator = S_SCALE * (t * COS_M - jnp.sqrt(1.0 - t * t) * SIN_M)
        m_all = m_ref[...]
        big = jnp.maximum(m_all, numerator)
        # denominator = exp(numerator) + sum_{j != y} exp(s*cos_j), max-scaled
        denom = jnp.exp(numerator - big) + l_ref[...] * jnp.exp(m_all - big)
        loss_ref[...] = numerator - (big + jnp.log(denom))


def arc_loss(x, weight, labels, *, out_features=None, block_b=256, block_c=512,
             matmul_dtype=jnp.bfloat16, cos_dtype=jnp.float32, return_cos=True,
             vmem_limit_bytes=None):
    """Pallas ArcLoss forward.

    Args:
      x:       (B, in_features) float
      weight:  (out_features, in_features) nn.Linear weight, OR the output of
               preprocess_weight() (then pass out_features=...).
      labels:  (B,) integer class indices in [0, out_features).
      block_b: batch tile (256 default; ~512 on v6e, 256-384 on v7x).
      block_c: class tile (rounded up to a multiple of 256).
      cos_dtype / return_cos: shrink (bf16) or drop the (B, C) cos writeback.
    Returns:
      (cos_theta (B, out_features), scalar loss) like the module, or just the
      scalar loss when return_cos=False.
    """
    B, D = x.shape
    D_pad = _round_up(D, 256)

    if out_features is None:
        C = weight.shape[0]
        TC, C_pad = _class_tiling(C, block_c)
        w_p = jnp.pad(weight.astype(matmul_dtype),
                      ((0, C_pad - C), (0, D_pad - D))).T     # (D_pad, C_pad)
    else:
        C = out_features
        TC, C_pad = _class_tiling(C, block_c)
        if weight.shape != (D_pad, C_pad) or weight.dtype != jnp.dtype(matmul_dtype):
            raise ValueError("preprocessed weight must be (D_pad, C_pad) in "
                             "matmul_dtype; build it with preprocess_weight() "
                             "using the same block_c / matmul_dtype")
        w_p = weight

    # Batch tile: keep >= 2 tiles when the batch allows it so v7x's two
    # TensorCores (the "parallel" axis) both get work.
    TB = min(block_b, _round_up(B, 8))
    if B > 8 and _round_up(B, TB) // TB < 2:
        TB = _round_up((B + 1) // 2, 8)
    B_pad = _round_up(B, TB)

    # Row-normalize x once here in f32, hand it to the kernel already in
    # matmul_dtype: no f32 x double buffer, no xn scratch in VMEM.
    x32 = x.astype(jnp.float32)
    inv = jax.lax.rsqrt(jnp.maximum(jnp.sum(x32 * x32, axis=1, keepdims=True),
                                    NORM_EPS * NORM_EPS))
    xn = (x32 * inv).astype(matmul_dtype)
    xn_p = jnp.pad(xn, ((0, B_pad - B), (0, D_pad - D)))
    labels_p = jnp.pad(labels.astype(jnp.int32), (0, B_pad - B)).reshape(B_pad, 1)

    kernel = functools.partial(
        _arcloss_kernel, num_classes=C, block_c=TC,
        needs_class_mask=(C_pad != C), store_cos=return_cos)

    loss_spec = pl.BlockSpec((TB, 1), lambda b, c: (b, 0))
    if return_cos:
        out_shape = (jax.ShapeDtypeStruct((B_pad, C_pad), cos_dtype),
                     jax.ShapeDtypeStruct((B_pad, 1), jnp.float32))
        out_specs = (pl.BlockSpec((TB, TC), lambda b, c: (b, c)), loss_spec)
    else:
        out_shape = jax.ShapeDtypeStruct((B_pad, 1), jnp.float32)
        out_specs = loss_spec

    # Explicit scoped-VMEM limit sized from the real double-buffered budget
    # (default scoped limit is only 16 MiB on v5e / 32 MiB on v6e+).
    itm = jnp.dtype(matmul_dtype).itemsize
    cos_bytes = jnp.dtype(cos_dtype).itemsize if return_cos else 0
    buf = 2 * (TB * D_pad * itm + D_pad * TC * itm + TB * TC * cos_bytes
               + 2 * TB * 128 * 4)
    buf += 3 * TB * 128 * 4
    if vmem_limit_bytes is None:
        vmem_limit_bytes = int(min(max(buf * 3 // 2 + (4 << 20), 32 << 20),
                                   100 << 20))

    out = pl.pallas_call(
        kernel,
        out_shape=out_shape,
        grid_spec=pltpu.PrefetchScalarGridSpec(
            num_scalar_prefetch=0,
            grid=(B_pad // TB, C_pad // TC),
            in_specs=[
                pl.BlockSpec((TB, D_pad), lambda b, c: (b, 0)),   # normalized x
                pl.BlockSpec((D_pad, TC), lambda b, c: (0, c)),   # W tile (K, N)
                pl.BlockSpec((TB, 1), lambda b, c: (b, 0)),       # labels
            ],
            out_specs=out_specs,
            scratch_shapes=[
                pltpu.VMEM((TB, 1), jnp.float32),   # running max
                pltpu.VMEM((TB, 1), jnp.float32),   # running sum-exp (excl. target)
                pltpu.VMEM((TB, 1), jnp.float32),   # target cos
            ]),
        compiler_params=pltpu.CompilerParams(
            dimension_semantics=("parallel", "arbitrary"),
            vmem_limit_bytes=vmem_limit_bytes),
    )(xn_p, w_p, labels_p)

    if return_cos:
        cos_pad, loss_pad = out
        return cos_pad[:B, :C], -jnp.mean(loss_pad[:B, 0])
    return -jnp.mean(out[:B, 0])


def _reference(x, weight, labels):
    """Pure-JAX reference reproducing the PyTorch semantics."""
    x_n = x / jnp.maximum(jnp.linalg.norm(x, axis=1, keepdims=True), NORM_EPS)
    cos_theta = jnp.dot(x_n, weight.T, precision=jax.lax.Precision.HIGHEST)
    B, C = cos_theta.shape
    tgt = cos_theta[jnp.arange(B), labels]
    t = jnp.clip(tgt, -1.0 + EPS, 1.0 - EPS)
    numerator = S_SCALE * jnp.cos(jnp.arccos(t) + MARGIN)
    mask = jax.nn.one_hot(labels, C, dtype=bool)
    excl = jnp.sum(jnp.where(mask, 0.0, jnp.exp(S_SCALE * cos_theta)), axis=1)
    denom = jnp.exp(numerator) + excl
    loss = numerator - jnp.log(denom)
    return cos_theta, -jnp.mean(loss)


if __name__ == "__main__":
    B, D, C = 8, 32, 16  # batch, in_features, out_features

    key = jax.random.PRNGKey(0)
    kx, kw, kl, kw2, kl2 = jax.random.split(key, 5)

    x = jax.random.normal(kx, (B, D), dtype=jnp.float32)
    bound = 1.0 / math.sqrt(D)   # nn.Linear default init
    weight = jax.random.uniform(kw, (C, D), dtype=jnp.float32,
                                minval=-bound, maxval=bound)
    labels = jax.random.randint(kl, (B,), 0, C, dtype=jnp.int32)

    cos_ref_v, loss_ref_v = _reference(x, weight, labels)

    # Exact f32 MXU path: tight tolerances.
    cos32, loss32 = arc_loss(x, weight, labels, matmul_dtype=jnp.float32)
    jax.block_until_ready((cos32, loss32))
    assert jnp.allclose(cos32, cos_ref_v, atol=1e-4, rtol=1e-4)
    assert jnp.allclose(loss32, loss_ref_v, atol=1e-3, rtol=1e-4)

    # Default bf16 MXU perf path: looser tolerances.
    cosbf, lossbf = arc_loss(x, weight, labels)
    jax.block_until_ready((cosbf, lossbf))
    assert jnp.allclose(cosbf, cos_ref_v, atol=1e-2, rtol=1e-2)
    assert jnp.allclose(lossbf, loss_ref_v, atol=0.5, rtol=5e-2)

    # Multi-class-tile config (3 class tiles, padded last tile) in exact f32:
    # exercises the online log-sum-exp accumulation + padded-class masking.
    C2 = 600
    weight2 = jax.random.uniform(kw2, (C2, D), dtype=jnp.float32,
                                 minval=-bound, maxval=bound)
    labels2 = jax.random.randint(kl2, (B,), 0, C2, dtype=jnp.int32)
    cos2_ref, loss2_ref = _reference(x, weight2, labels2)
    cos2, loss2 = arc_loss(x, weight2, labels2, block_c=256,
                           matmul_dtype=jnp.float32)
    jax.block_until_ready((cos2, loss2))
    assert jnp.allclose(cos2, cos2_ref, atol=1e-4, rtol=1e-4)
    assert jnp.allclose(loss2, loss2_ref, atol=1e-3, rtol=1e-4)

    # Preprocessed-weight + loss-only path (no cos writeback, no per-call cast).
    w2_t = preprocess_weight(weight2, matmul_dtype=jnp.float32, block_c=256)
    loss2b = arc_loss(x, w2_t, labels2, out_features=C2, block_c=256,
                      matmul_dtype=jnp.float32, return_cos=False)
    jax.block_until_ready(loss2b)
    assert jnp.allclose(loss2b, loss2_ref, atol=1e-3, rtol=1e-4)

    print("KERNEL_OK")
</pallas_src>

<mosaic_0001>
module attributes {stable_mosaic.version = 11 : i64} {
  func.func @_arcloss_kernel(%arg0: i32, %arg1: i32, %arg2: memref<8x256xf32, #tpu.memory_space<vmem>>, %arg3: memref<256x256xf32, #tpu.memory_space<vmem>>, %arg4: memref<8x1xi32, #tpu.memory_space<vmem>>, %arg5: memref<8x256xf32, #tpu.memory_space<vmem>>, %arg6: memref<8x1xf32, #tpu.memory_space<vmem>>, %arg7: memref<8x1xf32, #tpu.memory_space<vmem>>, %arg8: memref<8x1xf32, #tpu.memory_space<vmem>>, %arg9: memref<8x1xf32, #tpu.memory_space<vmem>>) attributes {dimension_semantics = [#tpu.dimension_semantics<parallel>, #tpu.dimension_semantics<arbitrary>], iteration_bounds = array<i64: 1, 1>, scalar_prefetch = 0 : i64, scratch_operands = 3 : i64, tpu.core_type = #tpu.core_type<tc>, window_params = [{transform_indices = @transform_0, window_bounds = array<i64: 8, 256>}, {transform_indices = @transform_1, window_bounds = array<i64: 256, 256>}, {transform_indices = @transform_2, window_bounds = array<i64: 8, 1>}, {transform_indices = @transform_3, window_bounds = array<i64: 8, 256>}, {transform_indices = @transform_4, window_bounds = array<i64: 8, 1>}]} {
    %c0_i32 = arith.constant 0 : i32
    %0 = arith.cmpi eq, %arg1, %c0_i32 : i32
    %1 = arith.extui %0 : i1 to i32
    %c0_i32_0 = arith.constant 0 : i32
    %2 = arith.cmpi ne, %1, %c0_i32_0 : i32
    scf.if %2 {
      %cst_29 = arith.constant -1.000000e+30 : f32
      %49 = vector.broadcast %cst_29 : f32 to vector<8x1xf32>
      %c0_30 = arith.constant 0 : index
      %c0_31 = arith.constant 0 : index
      %50 = vector.load %arg7[%c0_30, %c0_31] : memref<8x1xf32, #tpu.memory_space<vmem>>, vector<8x1xf32>
      tpu.vector_store %arg7[%c0_30, %c0_31], %49 {strides = array<i32>} : memref<8x1xf32, #tpu.memory_space<vmem>>, vector<8x1xf32>,
      %cst_32 = arith.constant 0.000000e+00 : f32
      %51 = vector.broadcast %cst_32 : f32 to vector<8x1xf32>
      %c0_33 = arith.constant 0 : index
      %c0_34 = arith.constant 0 : index
      %52 = vector.load %arg8[%c0_33, %c0_34] : memref<8x1xf32, #tpu.memory_space<vmem>>, vector<8x1xf32>
      tpu.vector_store %arg8[%c0_33, %c0_34], %51 {strides = array<i32>} : memref<8x1xf32, #tpu.memory_space<vmem>>, vector<8x1xf32>,
      %cst_35 = arith.constant 0.000000e+00 : f32
      %53 = vector.broadcast %cst_35 : f32 to vector<8x1xf32>
      %c0_36 = arith.constant 0 : index
      %c0_37 = arith.constant 0 : index
      %54 = vector.load %arg9[%c0_36, %c0_37] : memref<8x1xf32, #tpu.memory_space<vmem>>, vector<8x1xf32>
      tpu.vector_store %arg9[%c0_36, %c0_37], %53 {strides = array<i32>} : memref<8x1xf32, #tpu.memory_space<vmem>>, vector<8x1xf32>,
    } else {
    }
    %c0 = arith.constant 0 : index
    %c0_1 = arith.constant 0 : index
    %3 = vector.load %arg2[%c0, %c0_1] : memref<8x256xf32, #tpu.memory_space<vmem>>, vector<8x256xf32>
    %c0_2 = arith.constant 0 : index
    %c0_3 = arith.constant 0 : index
    %4 = vector.load %arg3[%c0_2, %c0_3] : memref<256x256xf32, #tpu.memory_space<vmem>>, vector<256x256xf32>
    %cst = arith.constant dense<0.000000e+00> : vector<8x256xf32>
    %5 = tpu.matmul %3, %4, %cst {dimension_numbers = #tpu.dot_dimension_numbers<[1], [0], [0], [1], [0, 0, 1, 1], [], []>} : vector<8x256xf32>, vector<256x256xf32>, vector<8x256xf32> -> vector<8x256xf32>
    %c0_4 = arith.constant 0 : index
    %c0_5 = arith.constant 0 : index
    %6 = vector.load %arg5[%c0_4, %c0_5] : memref<8x256xf32, #tpu.memory_space<vmem>>, vector<8x256xf32>
    tpu.vector_store %arg5[%c0_4, %c0_5], %5 {strides = array<i32>} : memref<8x256xf32, #tpu.memory_space<vmem>>, vector<8x256xf32>,
    %c0_6 = arith.constant 0 : index
    %c0_7 = arith.constant 0 : index
    %7 = vector.load %arg4[%c0_6, %c0_7] : memref<8x1xi32, #tpu.memory_space<vmem>>, vector<8x1xi32>
    %8 = tpu.iota {dimensions = array<i32: 1>} : vector<8x256xi32>
    %c256_i32 = arith.constant 256 : i32
    %9 = arith.muli %arg1, %c256_i32 : i32
    %10 = vector.broadcast %9 : i32 to vector<8x1xi32>
    %11 = arith.subi %7, %10 : vector<8x1xi32>
    %12 = vector.broadcast %11 : vector<8x1xi32> to vector<8x256xi32>
    %13 = arith.cmpi eq, %8, %12 : vector<8x256xi32>
    %c0_8 = arith.constant 0 : index
    %c0_9 = arith.constant 0 : index
    %14 = vector.load %arg9[%c0_8, %c0_9] : memref<8x1xf32, #tpu.memory_space<vmem>>, vector<8x1xf32>
    %cst_10 = arith.constant 0.000000e+00 : f32
    %15 = vector.broadcast %cst_10 : f32 to vector<8x256xf32>
    %16 = arith.select %13, %5, %15 : vector<8x256xi1>, vector<8x256xf32>
    %cst_11 = arith.constant dense<0.000000e+00> : vector<8xf32>
    %17 = vector.multi_reduction <add>, %16, %cst_11 [1] : vector<8x256xf32> to vector<8xf32>
    %18 = vector.shape_cast %17 : vector<8xf32> to vector<8x1xf32>
    %19 = arith.addf %14, %18 : vector<8x1xf32>
    %c0_12 = arith.constant 0 : index
    %c0_13 = arith.constant 0 : index
    %20 = vector.load %arg9[%c0_12, %c0_13] : memref<8x1xf32, #tpu.memory_space<vmem>>, vector<8x1xf32>
    tpu.vector_store %arg9[%c0_12, %c0_13], %19 {strides = array<i32>} : memref<8x1xf32, #tpu.memory_space<vmem>>, vector<8x1xf32>,
    %c256_i32_14 = arith.constant 256 : i32
    %21 = arith.muli %arg1, %c256_i32_14 : i32
    %c16_i32 = arith.constant 16 : i32
    %22 = arith.subi %c16_i32, %21 : i32
    %23 = vector.broadcast %22 : i32 to vector<8x256xi32>
    %24 = arith.cmpi sge, %8, %23 : vector<8x256xi32>
    %25 = arith.ori %13, %24 : vector<8x256xi1>
    %cst_15 = arith.constant 3.000000e+01 : f32
    %26 = vector.broadcast %cst_15 : f32 to vector<8x256xf32>
    %27 = arith.mulf %26, %5 : vector<8x256xf32>
    %cst_16 = arith.constant -1.000000e+30 : f32
    %28 = vector.broadcast %cst_16 : f32 to vector<8x256xf32>
    %29 = arith.select %25, %28, %27 : vector<8x256xi1>, vector<8x256xf32>
    %c0_17 = arith.constant 0 : index
    %c0_18 = arith.constant 0 : index
    %30 = vector.load %arg7[%c0_17, %c0_18] : memref<8x1xf32, #tpu.memory_space<vmem>>, vector<8x1xf32>
    %cst_19 = arith.constant dense<0xFF800000> : vector<8xf32>
    %31 = vector.multi_reduction <maximumf>, %29, %cst_19 [1] : vector<8x256xf32> to vector<8xf32>
    %32 = vector.shape_cast %31 : vector<8xf32> to vector<8x1xf32>
    %33 = arith.maximumf %30, %32 : vector<8x1xf32>
    %c0_20 = arith.constant 0 : index
    %c0_21 = arith.constant 0 : index
    %34 = vector.load %arg8[%c0_20, %c0_21] : memref<8x1xf32, #tpu.memory_space<vmem>>, vector<8x1xf32>
    %35 = arith.subf %30, %33 : vector<8x1xf32>
    %36 = math.exp %35 : vector<8x1xf32>
    %37 = arith.mulf %34, %36 : vector<8x1xf32>
    %38 = vector.broadcast %33 : vector<8x1xf32> to vector<8x256xf32>
    %39 = arith.subf %29, %38 : vector<8x256xf32>
    %40 = math.exp %39 : vector<8x256xf32>
    %cst_22 = arith.constant dense<0.000000e+00> : vector<8xf32>
    %41 = vector.multi_reduction <add>, %40, %cst_22 [1] : vector<8x256xf32> to vector<8xf32>
    %42 = vector.shape_cast %41 : vector<8xf32> to vector<8x1xf32>
    %43 = arith.addf %37, %42 : vector<8x1xf32>
    %c0_23 = arith.constant 0 : index
    %c0_24 = arith.constant 0 : index
    %44 = vector.load %arg8[%c0_23, %c0_24] : memref<8x1xf32, #tpu.memory_space<vmem>>, vector<8x1xf32>
    tpu.vector_store %arg8[%c0_23, %c0_24], %43 {strides = array<i32>} : memref<8x1xf32, #tpu.memory_space<vmem>>, vector<8x1xf32>,
    %c0_25 = arith.constant 0 : index
    %c0_26 = arith.constant 0 : index
    %45 = vector.load %arg7[%c0_25, %c0_26] : memref<8x1xf32, #tpu.memory_space<vmem>>, vector<8x1xf32>
    tpu.vector_store %arg7[%c0_25, %c0_26], %33 {strides = array<i32>} : memref<8x1xf32, #tpu.memory_space<vmem>>, vector<8x1xf32>,
    %c0_i32_27 = arith.constant 0 : i32
    %46 = arith.cmpi eq, %arg1, %c0_i32_27 : i32
    %47 = arith.extui %46 : i1 to i32
    %c0_i32_28 = arith.constant 0 : i32
    %48 = arith.cmpi ne, %47, %c0_i32_28 : i32
    scf.if %48 {
      %c0_29 = arith.constant 0 : index
      %c0_30 = arith.constant 0 : index
      %49 = vector.load %arg9[%c0_29, %c0_30] : memref<8x1xf32, #tpu.memory_space<vmem>>, vector<8x1xf32>
      %cst_31 = arith.constant -0.99999988 : f32
      %cst_32 = arith.constant 0.99999988 : f32
      %50 = vector.broadcast %cst_31 : f32 to vector<8x1xf32>
      %51 = arith.maximumf %50, %49 : vector<8x1xf32>
      %52 = vector.broadcast %cst_32 : f32 to vector<8x1xf32>
      %53 = arith.minimumf %52, %51 : vector<8x1xf32>
      %cst_33 = arith.constant 0.921060979 : f32
      %54 = vector.broadcast %cst_33 : f32 to vector<8x1xf32>
      %55 = arith.mulf %53, %54 : vector<8x1xf32>
      %56 = arith.mulf %53, %53 : vector<8x1xf32>
      %cst_34 = arith.constant 1.000000e+00 : f32
      %57 = vector.broadcast %cst_34 : f32 to vector<8x1xf32>
      %58 = arith.subf %57, %56 : vector<8x1xf32>
      %59 = math.sqrt %58 : vector<8x1xf32>
      %cst_35 = arith.constant 0.389418334 : f32
      %60 = vector.broadcast %cst_35 : f32 to vector<8x1xf32>
      %61 = arith.mulf %59, %60 : vector<8x1xf32>
      %62 = arith.subf %55, %61 : vector<8x1xf32>
      %cst_36 = arith.constant 3.000000e+01 : f32
      %63 = vector.broadcast %cst_36 : f32 to vector<8x1xf32>
      %64 = arith.mulf %63, %62 : vector<8x1xf32>
      %c0_37 = arith.constant 0 : index
      %c0_38 = arith.constant 0 : index
      %65 = vector.load %arg7[%c0_37, %c0_38] : memref<8x1xf32, #tpu.memory_space<vmem>>, vector<8x1xf32>
      %66 = arith.maximumf %65, %64 : vector<8x1xf32>
      %67 = arith.subf %64, %66 : vector<8x1xf32>
      %68 = math.exp %67 : vector<8x1xf32>
      %c0_39 = arith.constant 0 : index
      %c0_40 = arith.constant 0 : index
      %69 = vector.load %arg8[%c0_39, %c0_40] : memref<8x1xf32, #tpu.memory_space<vmem>>, vector<8x1xf32>
      %70 = arith.subf %65, %66 : vector<8x1xf32>
      %71 = math.exp %70 : vector<8x1xf32>
      %72 = arith.mulf %69, %71 : vector<8x1xf32>
      %73 = arith.addf %68, %72 : vector<8x1xf32>
      %74 = math.log %73 : vector<8x1xf32>
      %75 = arith.addf %66, %74 : vector<8x1xf32>
      %76 = arith.subf %64, %75 : vector<8x1xf32>
      %c0_41 = arith.constant 0 : index
      %c0_42 = arith.constant 0 : index
      %77 = vector.load %arg6[%c0_41, %c0_42] : memref<8x1xf32, #tpu.memory_space<vmem>>, vector<8x1xf32>
      tpu.vector_store %arg6[%c0_41, %c0_42], %76 {strides = array<i32>} : memref<8x1xf32, #tpu.memory_space<vmem>>, vector<8x1xf32>,
    } else {
    }
    return
  }
  func.func @transform_0(%arg0: i32, %arg1: i32) -> (i32, i32) {
    %c0_i32 = arith.constant 0 : i32
    %c0_i32_0 = arith.constant 0 : i32
    return %arg0, %c0_i32 : i32, i32
  }
  func.func @transform_1(%arg0: i32, %arg1: i32) -> (i32, i32) {
    %c0_i32 = arith.constant 0 : i32
    %c0_i32_0 = arith.constant 0 : i32
    return %c0_i32, %arg1 : i32, i32
  }
  func.func @transform_2(%arg0: i32, %arg1: i32) -> (i32, i32) {
    %c0_i32 = arith.constant 0 : i32
    %c0_i32_0 = arith.constant 0 : i32
    return %arg0, %c0_i32 : i32, i32
  }
  func.func @transform_3(%arg0: i32, %arg1: i32) -> (i32, i32) {
    %c0_i32 = arith.constant 0 : i32
    return %arg0, %arg1 : i32, i32
  }
  func.func @transform_4(%arg0: i32, %arg1: i32) -> (i32, i32) {
    %c0_i32 = arith.constant 0 : i32
    %c0_i32_0 = arith.constant 0 : i32
    return %arg0, %c0_i32 : i32, i32
  }
}

</mosaic_0001>

<llo_original>
// kernel: tpu_custom_call.1
$region0: #{tpu_custom_call.1}
  #allocation0 [shape = 'u32[]', space=smem, size = 0x4, offset = 0x4, fixed_abs, tag = 'smem constant byte address 0x4 - core index']
  #allocation1 [shape = 'u32[72,128]{1,0:T(1,128)}', space=vmem, size = 0x9000, scoped, tag = 'internal scratch']
  #allocation2 [shape = 'f32[8,1]{1,0:T(8,128)}', space=vmem, size = 0x1000, scoped, tag = 'scratch operand']
  #allocation3 [shape = 'f32[8,1]{1,0:T(8,128)}', space=vmem, size = 0x1000, scoped, tag = 'scratch operand']
  #allocation4 [shape = 'f32[8,1]{1,0:T(8,128)}', space=vmem, size = 0x1000, scoped, tag = 'scratch operand']
  %s0 = inlined_call_operand.hbm [shape: f32[8,256], index: 0, kind: input, shape index: {}]
  %s1 = inlined_call_operand.hbm [shape: f32[256,256], index: 1, kind: input, shape index: {}]
  %s2 = inlined_call_operand.vmem [shape: s32[8,1], index: 2, kind: input, shape index: {}]
  %s3 = inlined_call_operand.hbm [shape: f32[8,256], index: 3, kind: output, shape index: {0}]
  %s4 = inlined_call_operand.vmem [shape: f32[8,1], index: 4, kind: output, shape index: {1}]
  %5 = xla_tuple %s3, %s4
  %s6 = sld [smem:[#allocation0]]
  $region46: #{tpu_custom_call.1} parent=0
    _
  %s8 = ssub.s32 1, %s6
  %s9 = scalar_select 0, %s8, %s6
  $region1: #{tpu_custom_call.1} parent=0
    #allocation5 [shape = 'u8[8192]{0}', space=vmem, size = 0x2000, scoped, tag = 'input window, operand 0, single buffered']
    #allocation6 [shape = 's32[1]{0}', space=sflag, size = 0x4, scoped, tag = 'scoped memory for tpu_custom_call.1']
    #allocation7 [shape = 's32[1]{0}', space=sflag, size = 0x4, scoped, tag = 'scoped memory for tpu_custom_call.1']
    #allocation8 [shape = 'u8[262144]{0}', space=vmem, size = 0x40000, scoped, tag = 'input window, operand 1, single buffered']
    #allocation9 [shape = 's32[1]{0}', space=sflag, size = 0x4, scoped, tag = 'scoped memory for tpu_custom_call.1']
    #allocation10 [shape = 'u8[8192]{0}', space=vmem, size = 0x2000, scoped, tag = 'output window, operand 0, single buffered']
    %10 = vsyncpa [#allocation6], 0
    %11 = vsyncpa [#allocation9], 0
    %12 = vsyncpa [#allocation7], 0
    // Predicated region
    $region2: #{tpu_custom_call.1} parent=1 // pred_check
      _
    $region3: #{tpu_custom_call.1} parent=1 // pred_check_branch
      %14 = sbr.rel (0) target = $region5
    $region4: #{tpu_custom_call.1} parent=1 // pred_region
      %16 = vsyncadd [#allocation6], 0
      %s18 = sshll.u32 %s0, 4
      %s19 = int_to_ptr.hbm [resolvable:$true] %s18
      %s20 = sshll.u32 [#allocation5], 4
      %s21 = int_to_ptr.vmem [resolvable:$true] %s20
      %23 = dma.hbm_to_vmem [thread:$0]  %s19, 256, %s21, [#allocation6]
    $region5: #{tpu_custom_call.1} parent=1 // pred_fallthru
      _
    // Predicated region
    $region6: #{tpu_custom_call.1} parent=1 // pred_check
      _
    $region7: #{tpu_custom_call.1} parent=1 // pred_check_branch
      %25 = sbr.rel (0) target = $region9
    $region8: #{tpu_custom_call.1} parent=1 // pred_region
      %27 = vsyncadd [#allocation9], 0
      %s28 = sshll.u32 %s1, 4
      %s29 = int_to_ptr.hbm [resolvable:$true] %s28
      %s30 = sshll.u32 [#allocation8], 4
      %s31 = int_to_ptr.vmem [resolvable:$true] %s30
      %36 = dma.hbm_to_vmem [thread:$0]  %s29, 8192, %s31, [#allocation9], 256, 256, 16
    $region9: #{tpu_custom_call.1} parent=1 // pred_fallthru
      _
    // Predicated region
    $region10: #{tpu_custom_call.1} parent=1 // pred_check
      _
    $region11: #{tpu_custom_call.1} parent=1 // pred_check_branch
      %38 = sbr.rel (0) target = $region13
    $region12: #{tpu_custom_call.1} parent=1 // pred_region
      _
    $region13: #{tpu_custom_call.1} parent=1 // pred_fallthru
      _
    // Predicated region
    $region14: #{tpu_custom_call.1} parent=1 // pred_check
      _
    $region15: #{tpu_custom_call.1} parent=1 // pred_check_branch
      %40 = sbr.rel (0) target = $region17
    $region16: #{tpu_custom_call.1} parent=1 // pred_region
      %42 = dma.done [#allocation6], 256
    $region17: #{tpu_custom_call.1} parent=1 // pred_fallthru
      _
    // Predicated region
    $region18: #{tpu_custom_call.1} parent=1 // pred_check
      _
    $region19: #{tpu_custom_call.1} parent=1 // pred_check_branch
      %44 = sbr.rel (0) target = $region21
    $region20: #{tpu_custom_call.1} parent=1 // pred_region
      %46 = dma.done [#allocation9], 8192
    $region21: #{tpu_custom_call.1} parent=1 // pred_fallthru
      _
    %p47 = scmp.eq.s32.totalorder 0, 0
    // Predicated region
    $region22: #{tpu_custom_call.1} parent=1 // pred_check
      %p48 = pneg %p47
    $region23: #{tpu_custom_call.1} parent=1 // pred_check_branch
      %50 = sbr.rel (%p48) target = $region25
    $region24: #{tpu_custom_call.1} parent=1 // pred_region
      %vm51 = vcmask 7168
      %52 = vst.msk [vmem:[#allocation2] sm:$0xff] %vm51, -1e+30
      %53 = vst.msk [vmem:[#allocation3] sm:$0xff] %vm51, 0.0
      %54 = vst.msk [vmem:[#allocation4] sm:$0xff] %vm51, 0.0
    $region25: #{tpu_custom_call.1} parent=1 // pred_fallthru
      _
    %v55 = vld [vmem:[#allocation5] sm:$0xff]
    %v56 = vld [vmem:[#allocation5 + $0x8] sm:$0xff]
    %v57 = vld [vmem:[#allocation8] sm:$0xff]
    %v58 = vld [vmem:[#allocation8 + $0x8] sm:$0xff]
    %v59 = vld [vmem:[#allocation8 + $0x10] sm:$0xff]
    %v60 = vld [vmem:[#allocation8 + $0x18] sm:$0xff]
    %v61 = vld [vmem:[#allocation8 + $0x20] sm:$0xff]
    %v62 = vld [vmem:[#allocation8 + $0x28] sm:$0xff]
    %v63 = vld [vmem:[#allocation8 + $0x30] sm:$0xff]
    %v64 = vld [vmem:[#allocation8 + $0x38] sm:$0xff]
    %v65 = vld [vmem:[#allocation8 + $0x40] sm:$0xff]
    %v66 = vld [vmem:[#allocation8 + $0x48] sm:$0xff]
    %v67 = vld [vmem:[#allocation8 + $0x50] sm:$0xff]
    %v68 = vld [vmem:[#allocation8 + $0x58] sm:$0xff]
    %v69 = vld [vmem:[#allocation8 + $0x60] sm:$0xff]
    %v70 = vld [vmem:[#allocation8 + $0x68] sm:$0xff]
    %v71 = vld [vmem:[#allocation8 + $0x70] sm:$0xff]
    %v72 = vld [vmem:[#allocation8 + $0x78] sm:$0xff]
    %v73 = vld [vmem:[#allocation8 + $0x80] sm:$0xff]
    %v74 = vld [vmem:[#allocation8 + $0x88] sm:$0xff]
    %v75 = vld [vmem:[#allocation8 + $0x90] sm:$0xff]
    %v76 = vld [vmem:[#allocation8 + $0x98] sm:$0xff]
    %v77 = vld [vmem:[#allocation8 + $0xa0] sm:$0xff]
    %v78 = vld [vmem:[#allocation8 + $0xa8] sm:$0xff]
    %v79 = vld [vmem:[#allocation8 + $0xb0] sm:$0xff]
    %v80 = vld [vmem:[#allocation8 + $0xb8] sm:$0xff]
    %v81 = vld [vmem:[#allocation8 + $0xc0] sm:$0xff]
    %v82 = vld [vmem:[#allocation8 + $0xc8] sm:$0xff]
    %v83 = vld [vmem:[#allocation8 + $0xd0] sm:$0xff]
    %v84 = vld [vmem:[#allocation8 + $0xd8] sm:$0xff]
    %v85 = vld [vmem:[#allocation8 + $0xe0] sm:$0xff]
    %v86 = vld [vmem:[#allocation8 + $0xe8] sm:$0xff]
    %v87 = vld [vmem:[#allocation8 + $0xf0] sm:$0xff]
    %v88 = vld [vmem:[#allocation8 + $0xf8] sm:$0xff]
    %v89 = vld [vmem:[#allocation8 + $0x100] sm:$0xff]
    %v90 = vld [vmem:[#allocation8 + $0x108] sm:$0xff]
    %v91 = vld [vmem:[#allocation8 + $0x110] sm:$0xff]
    %v92 = vld [vmem:[#allocation8 + $0x118] sm:$0xff]
    %v93 = vld [vmem:[#allocation8 + $0x120] sm:$0xff]
    %v94 = vld [vmem:[#allocation8 + $0x128] sm:$0xff]
    %v95 = vld [vmem:[#allocation8 + $0x130] sm:$0xff]
    %v96 = vld [vmem:[#allocation8 + $0x138] sm:$0xff]
    %v97 = vld [vmem:[#allocation8 + $0x140] sm:$0xff]
    %v98 = vld [vmem:[#allocation8 + $0x148] sm:$0xff]
    %v99 = vld [vmem:[#allocation8 + $0x150] sm:$0xff]
    %v100 = vld [vmem:[#allocation8 + $0x158] sm:$0xff]
    %v101 = vld [vmem:[#allocation8 + $0x160] sm:$0xff]
    %v102 = vld [vmem:[#allocation8 + $0x168] sm:$0xff]
    %v103 = vld [vmem:[#allocation8 + $0x170] sm:$0xff]
    %v104 = vld [vmem:[#allocation8 + $0x178] sm:$0xff]
    %v105 = vld [vmem:[#allocation8 + $0x180] sm:$0xff]
    %v106 = vld [vmem:[#allocation8 + $0x188] sm:$0xff]
    %v107 = vld [vmem:[#allocation8 + $0x190] sm:$0xff]
    %v108 = vld [vmem:[#allocation8 + $0x198] sm:$0xff]
    %v109 = vld [vmem:[#allocation8 + $0x1a0] sm:$0xff]
    %v110 = vld [vmem:[#allocation8 + $0x1a8] sm:$0xff]
    %v111 = vld [vmem:[#allocation8 + $0x1b0] sm:$0xff]
    %v112 = vld [vmem:[#allocation8 + $0x1b8] sm:$0xff]
    %v113 = vld [vmem:[#allocation8 + $0x1c0] sm:$0xff]
    %v114 = vld [vmem:[#allocation8 + $0x1c8] sm:$0xff]
    %v115 = vld [vmem:[#allocation8 + $0x1d0] sm:$0xff]
    %v116 = vld [vmem:[#allocation8 + $0x1d8] sm:$0xff]
    %v117 = vld [vmem:[#allocation8 + $0x1e0] sm:$0xff]
    %v118 = vld [vmem:[#allocation8 + $0x1e8] sm:$0xff]
    %v119 = vld [vmem:[#allocation8 + $0x1f0] sm:$0xff]
    %v120 = vld [vmem:[#allocation8 + $0x1f8] sm:$0xff]
    %121 = vmatpush.msra.mxu0 %v87
    %122 = vmatpush.msra.mxu0 %v85
    %123 = vmatpush.msra.mxu0 %v83
    %124 = vmatpush.msra.mxu0 %v81
    %125 = vmatpush.msra.mxu0 %v79
    %126 = vmatpush.msra.mxu0 %v77
    %127 = vmatpush.msra.mxu0 %v75
    %128 = vmatpush.msra.mxu0 %v73
    %129 = vmatpush.msra.mxu0 %v71
    %130 = vmatpush.msra.mxu0 %v69
    %131 = vmatpush.msra.mxu0 %v67
    %132 = vmatpush.msra.mxu0 %v65
    %133 = vmatpush.msra.mxu0 %v63
    %134 = vmatpush.msra.mxu0 %v61
    %135 = vmatpush.msra.mxu0 %v59
    %136 = vmatpush.msra.mxu0 %v57
    %137 = vmatmul.f32.gmra.mxu0 %v55
    %v138 = vpop.f32.mrf.mxu0
    %v139 = vadd.f32 0.0, %v138
    %140 = vdwg.mxu0
    %141 = vmatpush.msra.mxu0 %v119
    %142 = vmatpush.msra.mxu0 %v117
    %143 = vmatpush.msra.mxu0 %v115
    %144 = vmatpush.msra.mxu0 %v113
    %145 = vmatpush.msra.mxu0 %v111
    %146 = vmatpush.msra.mxu0 %v109
    %147 = vmatpush.msra.mxu0 %v107
    %148 = vmatpush.msra.mxu0 %v105
    %149 = vmatpush.msra.mxu0 %v103
    %150 = vmatpush.msra.mxu0 %v101
    %151 = vmatpush.msra.mxu0 %v99
    %152 = vmatpush.msra.mxu0 %v97
    %153 = vmatpush.msra.mxu0 %v95
    %154 = vmatpush.msra.mxu0 %v93
    %155 = vmatpush.msra.mxu0 %v91
    %156 = vmatpush.msra.mxu0 %v89
    %157 = vmatmul.f32.gmra.mxu0 %v56
    %v158 = vpop.f32.mrf.mxu0
    %v159 = vadd.f32 %v139, %v158
    %160 = vdwg.mxu0
    %161 = vmatpush.msra.mxu0 %v88
    %162 = vmatpush.msra.mxu0 %v86
    %163 = vmatpush.msra.mxu0 %v84
    %164 = vmatpush.msra.mxu0 %v82
    %165 = vmatpush.msra.mxu0 %v80
    %166 = vmatpush.msra.mxu0 %v78
    %167 = vmatpush.msra.mxu0 %v76
    %168 = vmatpush.msra.mxu0 %v74
    %169 = vmatpush.msra.mxu0 %v72
    %170 = vmatpush.msra.mxu0 %v70
    %171 = vmatpush.msra.mxu0 %v68
    %172 = vmatpush.msra.mxu0 %v66
    %173 = vmatpush.msra.mxu0 %v64
    %174 = vmatpush.msra.mxu0 %v62
    %175 = vmatpush.msra.mxu0 %v60
    %176 = vmatpush.msra.mxu0 %v58
    %177 = vmatmul.f32.gmra.mxu0 %v55
    %v178 = vpop.f32.mrf.mxu0
    %v179 = vadd.f32 0.0, %v178
    %180 = vdwg.mxu0
    %181 = vmatpush.msra.mxu0 %v120
    %182 = vmatpush.msra.mxu0 %v118
    %183 = vmatpush.msra.mxu0 %v116
    %184 = vmatpush.msra.mxu0 %v114
    %185 = vmatpush.msra.mxu0 %v112
    %186 = vmatpush.msra.mxu0 %v110
    %187 = vmatpush.msra.mxu0 %v108
    %188 = vmatpush.msra.mxu0 %v106
    %189 = vmatpush.msra.mxu0 %v104
    %190 = vmatpush.msra.mxu0 %v102
    %191 = vmatpush.msra.mxu0 %v100
    %192 = vmatpush.msra.mxu0 %v98
    %193 = vmatpush.msra.mxu0 %v96
    %194 = vmatpush.msra.mxu0 %v94
    %195 = vmatpush.msra.mxu0 %v92
    %196 = vmatpush.msra.mxu0 %v90
    %197 = vmatmul.f32.gmra.mxu0 %v56
    %v198 = vpop.f32.mrf.mxu0
    %v199 = vadd.f32 %v179, %v198
    %200 = vdwg.mxu0
    %201 = vst [vmem:[#allocation10] sm:$0xff] %v159
    %202 = vst [vmem:[#allocation10 + $0x8] sm:$0xff] %v199
    %v203 = vld [vmem:[%s2] sm:$0xff]
    %v204 = vlaneseq
    %v205 = vand.u32 %v204, 127
    %v206 = vadd.s32 %v205, 128
    %s207 = smul.u32 0, 256
    %v208 = vstv %s207
    %v209 = vsub.s32 %v203, %v208
    %210 = vset.pattern.permute.xlu0 0
    %211 = vperm.xlu0 %210, %v209
    %v212 = vpop.permute.xlu0 %211
    %vm213 = vcmp.eq.s32.totalorder %v205, %v212
    %vm214 = vcmp.eq.s32.totalorder %v206, %v212
    %v215 = vld [vmem:[#allocation4] sm:$0xff]
    %v216 = vsel %vm213, %v159, 0.0
    %v217 = vsel %vm214, %v199, 0.0
    %v218 = vadd.f32 %v216, %v217
    %219 = vadd.xlane.f32.xlu0 %v218
    %v220 = vpop.xlane.xlu0 %219
    %v221 = vadd.f32 %v215, %v220
    %vm222 = vcmask 7168
    %223 = vst.msk [vmem:[#allocation4] sm:$0xff] %vm222, %v221
    %s224 = ssub.s32 16, %s207
    %v225 = vstv %s224
    %vm226 = vcmp.ge.s32.totalorder %v205, %v225
    %vm227 = vcmp.ge.s32.totalorder %v206, %v225
    %vm228 = vmor %vm213, %vm226
    %vm229 = vmor %vm214, %vm227
    %v230 = vmul.f32 %v159, 30.0
    %v231 = vmul.f32 %v199, 30.0
    %v232 = vsel %vm228, -1e+30, %v230
    %v233 = vsel %vm229, -1e+30, %v231
    %v234 = vld [vmem:[#allocation2] sm:$0xff]
    %v235 = vmax.f32 %v232, %v233
    %236 = vmax.xlane.f32.xlu0 %v235
    %v237 = vpop.xlane.xlu0 %236
    %v238 = vmax.f32 %v234, %v237
    %v239 = vld [vmem:[#allocation3] sm:$0xff]
    %v240 = vsub.f32 %v234, %v238
    %v241 = vmul.f32 %v240, 1.442695
    %v242 = vpow.pop %v241
    %v243 = vmul.f32 %v239, %v242
    %245 = vset.pattern.permute.xlu0 0
    %246 = vperm.xlu0 %245, %v238
    %v247 = vpop.permute.xlu0 %246
    %v249 = vsub.f32 %v232, %v247
    %v250 = vsub.f32 %v233, %v247
    %v251 = vmul.f32 %v249, 1.442695
    %v252 = vpow.pop %v251
    %v253 = vmul.f32 %v250, 1.442695
    %v254 = vpow.pop %v253
    %v255 = vadd.f32 %v252, %v254
    %256 = vadd.xlane.f32.xlu0 %v255
    %v257 = vpop.xlane.xlu0 %256
    %v258 = vadd.f32 %v243, %v257
    %259 = vst.msk [vmem:[#allocation3] sm:$0xff] %vm222, %v258
    %260 = vst.msk [vmem:[#allocation2] sm:$0xff] %vm222, %v238
    // Predicated region
    $region26: #{tpu_custom_call.1} parent=1 // pred_check
      %p261 = pneg %p47
    $region27: #{tpu_custom_call.1} parent=1 // pred_check_branch
      %263 = sbr.rel (%p261) target = $region29
    $region28: #{tpu_custom_call.1} parent=1 // pred_region
      %v264 = vld [vmem:[#allocation4] sm:$0xff]
      %v265 = vmax.f32 %v264, -0.9999999
      %v266 = vmin.f32 %v265, 0.9999999
      %v267 = vmul.f32 %v266, 0.921061
      %v268 = vmul.f32 %v266, %v266
      %v269 = vsub.f32 1.0, %v268
      %v270 = vrsqrt.pop %v269
      %v271 = vmul.f32 %v270, %v269
      %v272 = vmul.f32 %v271, %v270
      %v273 = vmul.f32 0.5, %v272
      %v274 = vsub.f32 1.5, %v273
      %v275 = vmul.f32 %v270, %v274
      %v276 = vmul.f32 %v269, %v275
      %vm277 = vcmp.eq.f32.partialorder %v269, inf
      %v278 = vsel %vm277, %v269, %v276
      %vm279 = vcmp.eq.f32.partialorder %v269, 0.0
      %v280 = vand.u32 %v269, 2147483648
      %v281 = vsel %vm279, %v280, %v278
      %v282 = vmul.f32 %v281, 0.38941833
      %v283 = vsub.f32 %v267, %v282
      %v284 = vmul.f32 %v283, 30.0
      %v285 = vld [vmem:[#allocation2] sm:$0xff]
      %v286 = vmax.f32 %v285, %v284
      %v287 = vsub.f32 %v284, %v286
      %v288 = vmul.f32 %v287, 1.442695
      %v289 = vpow.pop %v288
      %v290 = vld [vmem:[#allocation3] sm:$0xff]
      %v291 = vsub.f32 %v285, %v286
      %v292 = vmul.f32 %v291, 1.442695
      %v293 = vpow.pop %v292
      %v294 = vmul.f32 %v290, %v293
      %v295 = vadd.f32 %v289, %v294
      %v296 = vlog2.pop %v295
      %v297 = vmul.f32 %v296, 0.6931472
      %v298 = vadd.f32 %v286, %v297
      %v299 = vsub.f32 %v284, %v298
      %300 = vst.msk [vmem:[%s4] sm:$0xff] %vm222, %v299
    $region29: #{tpu_custom_call.1} parent=1 // pred_fallthru
      _
    // Predicated region
    $region30: #{tpu_custom_call.1} parent=1 // pred_check
      _
    $region31: #{tpu_custom_call.1} parent=1 // pred_check_branch
      %302 = sbr.rel (0) target = $region33
    $region32: #{tpu_custom_call.1} parent=1 // pred_region
      %304 = vsyncadd [#allocation7], 0
      %s306 = sshll.u32 [#allocation10], 4
      %s307 = int_to_ptr.vmem [resolvable:$true] %s306
      %s308 = sshll.u32 %s3, 4
      %s309 = int_to_ptr.hbm [resolvable:$true] %s308
      %311 = dma.vmem_to_hbm [thread:$0]  %s307, 256, %s309, [#allocation7]
    $region33: #{tpu_custom_call.1} parent=1 // pred_fallthru
      _
    // Predicated region
    $region34: #{tpu_custom_call.1} parent=1 // pred_check
      _
    $region35: #{tpu_custom_call.1} parent=1 // pred_check_branch
      %313 = sbr.rel (0) target = $region37
    $region36: #{tpu_custom_call.1} parent=1 // pred_region
      _
    $region37: #{tpu_custom_call.1} parent=1 // pred_fallthru
      _
    // Predicated region
    $region38: #{tpu_custom_call.1} parent=1 // pred_check
      _
    $region39: #{tpu_custom_call.1} parent=1 // pred_check_branch
      %315 = sbr.rel (0) target = $region41
    $region40: #{tpu_custom_call.1} parent=1 // pred_region
      %317 = dma.done [#allocation7], 256
    $region41: #{tpu_custom_call.1} parent=1 // pred_fallthru
      _
    // Predicated region
    $region42: #{tpu_custom_call.1} parent=1 // pred_check
      _
    $region43: #{tpu_custom_call.1} parent=1 // pred_check_branch
      %319 = sbr.rel (0) target = $region45
    $region44: #{tpu_custom_call.1} parent=1 // pred_region
      _
    $region45: #{tpu_custom_call.1} parent=1 // pred_fallthru
      _
    %320 = vsyncpa [#allocation6], 1
    %321 = vsyncpa [#allocation9], 1
    %322 = vsyncpa [#allocation7], 1

</llo_original>
